<compile_context>
chip_gen: v6e
topology: v6e:2x2x1
jax: 0.10.0
libtpu: 0.0.40
codegen_flags: <defaults>
</compile_context>

<pallas_src>
import functools

import jax
import jax.numpy as jnp
from jax.experimental import pallas as pl
from jax.experimental.pallas import tpu as pltpu

NEG_SLOPE = 0.01  # F.leaky_relu default negative_slope


def _round_up(n, m):
    return ((n + m - 1) // m) * m


def _default_elementwise_dtype():
    """bf16 elementwise tail on v6e/v7x (bf16 VALUs); f32 on v5e and older."""
    try:
        kind = jax.devices()[0].device_kind.lower()
    except Exception:
        return jnp.float32
    if any(v in kind for v in ("v2", "v3", "v4", "v5")):
        return jnp.float32
    return jnp.bfloat16


def mlp_kernel(x_ref,
               w1_ref,
               w2_ref, b2_ref,
               w3_ref, b3_ref,
               w4_ref, b4_ref,
               w5_ref, b5_ref,
               o_ref, *, act_dtype):
    """Whole 5-layer MLP for one batch tile: 5 MXU matmuls + VPU bias/leaky_relu."""

    def layer(h, w_ref, b_ref=None):
        w = w_ref[...]
        acc = jnp.dot(h.astype(w.dtype), w, preferred_element_type=jnp.float32)
        acc = acc.astype(act_dtype)          # bf16 tail on v6e/v7x, f32 on v5e
        if b_ref is not None:
            acc = acc + b_ref[...]           # bias broadcast (1,N) -> (TB,N)
        return jnp.maximum(acc, NEG_SLOPE * acc)   # leaky_relu, 2 VPU ops/elem

    h = x_ref[...]
    h = layer(h, w1_ref)                     # layer-1 bias folded into w1_aug
    h = layer(h, w2_ref, b2_ref)
    h = layer(h, w3_ref, b3_ref)
    h = layer(h, w4_ref, b4_ref)
    h = layer(h, w5_ref, b5_ref)
    o_ref[...] = h.astype(o_ref.dtype)


def prepare_params(params, weight_dtype=jnp.bfloat16, elementwise_dtype=None):
    """One-time prep: fold bias1 into an augmented (k_pad, 128) W1, cast weights
    and biases once (instead of per call). params: list of (W (in,out), b (1,out))."""
    if elementwise_dtype is None:
        elementwise_dtype = _default_elementwise_dtype()
    w1, b1 = params[0]
    in_dim = w1.shape[0]
    k_pad = _round_up(in_dim + 1, 8)         # contraction dim incl. ones column
    w1_aug = jnp.zeros((k_pad, w1.shape[1]), jnp.float32)
    w1_aug = w1_aug.at[:in_dim, :].set(w1.astype(jnp.float32))
    w1_aug = w1_aug.at[in_dim, :].set(b1.reshape(-1).astype(jnp.float32))
    weights = ([w1_aug.astype(weight_dtype)]
               + [w.astype(weight_dtype) for (w, _) in params[1:]])
    biases = [b.reshape(1, -1).astype(elementwise_dtype) for (_, b) in params[1:]]
    return dict(weights=weights, biases=biases, in_dim=in_dim, k_pad=k_pad,
                elementwise_dtype=elementwise_dtype)


def vitalsign_feature_mel_thickness(x, prepared, *, block_b=2048, min_tiles=1):
    """x: (B, 14) float32.  prepared: output of prepare_params()."""
    B, in_dim = x.shape
    assert in_dim == prepared["in_dim"]
    k_pad = prepared["k_pad"]
    weights, biases = prepared["weights"], prepared["biases"]
    out_dim = weights[-1].shape[1]

    # x -> (B, k_pad): ones column at in_dim folds bias1 into the contraction.
    x_p = jnp.pad(x.astype(jnp.float32), ((0, 0), (0, k_pad - in_dim)))
    x_p = x_p.at[:, in_dim].set(1.0)

    # Adaptive batch tile: bounds padding waste to < 1 tile while keeping steps
    # large.  Pass min_tiles=2 on v7x so mid-size batches split across both TCs.
    n_tiles = max(pl.cdiv(B, block_b), min(min_tiles, pl.cdiv(B, 8)))
    tb = _round_up(pl.cdiv(B, n_tiles), 8)
    b_pad = _round_up(B, tb)
    if b_pad != B:
        # Padded rows get no ones column -> garbage outputs; sliced off below.
        x_p = jnp.pad(x_p, ((0, b_pad - B), (0, 0)))
    grid = (b_pad // tb,)

    flat_args = [x_p, weights[0]]
    in_specs = [pl.BlockSpec((tb, k_pad), lambda i: (i, 0)),        # pipelined
                pl.BlockSpec(weights[0].shape, lambda i: (0, 0))]   # resident
    for w, b in zip(weights[1:], biases):
        flat_args += [w, b]
        in_specs += [pl.BlockSpec(w.shape, lambda i: (0, 0)),       # resident
                     pl.BlockSpec(b.shape, lambda i: (0, 0))]       # resident

    kernel = functools.partial(mlp_kernel,
                               act_dtype=prepared["elementwise_dtype"])
    out = pl.pallas_call(
        kernel,
        out_shape=jax.ShapeDtypeStruct((b_pad, out_dim), jnp.float32),
        grid=grid,
        in_specs=in_specs,
        out_specs=pl.BlockSpec((tb, out_dim), lambda i: (i, 0)),
        compiler_params=pltpu.CompilerParams(
            dimension_semantics=("parallel",)),
    )(*flat_args)
    return out[:B]


def init_params(key):
    """Deterministic init mirroring nn.Linear's default U(-1/sqrt(fan_in), +)."""
    dims = [(14, 128), (128, 128), (128, 128), (128, 128), (128, 128)]
    params = []
    for (fan_in, fan_out) in dims:
        key, kw, kb = jax.random.split(key, 3)
        bound = 1.0 / jnp.sqrt(jnp.float32(fan_in))
        w = jax.random.uniform(kw, (fan_in, fan_out), jnp.float32, -bound, bound)
        b = jax.random.uniform(kb, (1, fan_out), jnp.float32, -bound, bound)
        params.append((w, b))
    return params


def reference_forward(x, params):
    h = x
    for (w, b) in params:
        h = jnp.dot(h, w) + b
        h = jnp.where(h > 0, h, NEG_SLOPE * h)
    return h


if __name__ == "__main__":
    key = jax.random.PRNGKey(0)
    key, kx = jax.random.split(key)

    batch = 8
    input_dim = 14  # module's self.input_dim
    x = jax.random.normal(kx, (batch, input_dim), jnp.float32)
    params = init_params(key)
    ref = reference_forward(x, params)

    # Exact path (f32 weights + f32 elementwise): validates kernel structure.
    prep_f32 = prepare_params(params, weight_dtype=jnp.float32,
                              elementwise_dtype=jnp.float32)
    out_f32 = jax.block_until_ready(vitalsign_feature_mel_thickness(x, prep_f32))
    assert out_f32.shape == (batch, 128)
    assert jnp.allclose(out_f32, ref, atol=1e-5, rtol=1e-5), "f32 mismatch vs reference"

    # Default fast path: bf16 weights everywhere, bf16 elementwise tail on v6e/v7x.
    prep = prepare_params(params)
    out = jax.block_until_ready(vitalsign_feature_mel_thickness(x, prep))
    assert out.shape == (batch, 128)
    assert jnp.allclose(out, ref, atol=6e-2, rtol=6e-2), "bf16 mismatch vs reference"

    # Larger, non-tile-multiple batch exercises adaptive tiling + padding/slicing
    # (and min_tiles=2, the v7x two-TensorCore split).
    x_big = jax.random.normal(jax.random.PRNGKey(1), (300, input_dim), jnp.float32)
    ref_big = reference_forward(x_big, params)
    out_big = jax.block_until_ready(
        vitalsign_feature_mel_thickness(x_big, prep_f32, block_b=128, min_tiles=2))
    assert out_big.shape == (300, 128)
    assert jnp.allclose(out_big, ref_big, atol=1e-4, rtol=1e-4), "big-batch mismatch"

    print("KERNEL_OK")
</pallas_src>

<mosaic_0001>
module attributes {stable_mosaic.version = 11 : i64} {
  func.func @mlp_kernel(%arg0: i32, %arg1: memref<8x16xf32, #tpu.memory_space<vmem>>, %arg2: memref<16x128xf32, #tpu.memory_space<vmem>>, %arg3: memref<128x128xf32, #tpu.memory_space<vmem>>, %arg4: memref<1x128xf32, #tpu.memory_space<vmem>>, %arg5: memref<128x128xf32, #tpu.memory_space<vmem>>, %arg6: memref<1x128xf32, #tpu.memory_space<vmem>>, %arg7: memref<128x128xf32, #tpu.memory_space<vmem>>, %arg8: memref<1x128xf32, #tpu.memory_space<vmem>>, %arg9: memref<128x128xf32, #tpu.memory_space<vmem>>, %arg10: memref<1x128xf32, #tpu.memory_space<vmem>>, %arg11: memref<8x128xf32, #tpu.memory_space<vmem>>) attributes {dimension_semantics = [#tpu.dimension_semantics<parallel>], iteration_bounds = array<i64: 1>, scalar_prefetch = 0 : i64, scratch_operands = 0 : i64, tpu.core_type = #tpu.core_type<tc>, window_params = [{transform_indices = @transform_0, window_bounds = array<i64: 8, 16>}, {pipeline_mode = #tpu.pipeline_mode<synchronous>, transform_indices = @transform_1, window_bounds = array<i64: 16, 128>}, {pipeline_mode = #tpu.pipeline_mode<synchronous>, transform_indices = @transform_2, window_bounds = array<i64: 128, 128>}, {pipeline_mode = #tpu.pipeline_mode<synchronous>, transform_indices = @transform_3, window_bounds = array<i64: 1, 128>}, {pipeline_mode = #tpu.pipeline_mode<synchronous>, transform_indices = @transform_4, window_bounds = array<i64: 128, 128>}, {pipeline_mode = #tpu.pipeline_mode<synchronous>, transform_indices = @transform_5, window_bounds = array<i64: 1, 128>}, {pipeline_mode = #tpu.pipeline_mode<synchronous>, transform_indices = @transform_6, window_bounds = array<i64: 128, 128>}, {pipeline_mode = #tpu.pipeline_mode<synchronous>, transform_indices = @transform_7, window_bounds = array<i64: 1, 128>}, {pipeline_mode = #tpu.pipeline_mode<synchronous>, transform_indices = @transform_8, window_bounds = array<i64: 128, 128>}, {pipeline_mode = #tpu.pipeline_mode<synchronous>, transform_indices = @transform_9, window_bounds = array<i64: 1, 128>}, {transform_indices = @transform_10, window_bounds = array<i64: 8, 128>}]} {
    %c0 = arith.constant 0 : index
    %c0_0 = arith.constant 0 : index
    %0 = vector.load %arg1[%c0, %c0_0] : memref<8x16xf32, #tpu.memory_space<vmem>>, vector<8x16xf32>
    %c0_1 = arith.constant 0 : index
    %c0_2 = arith.constant 0 : index
    %1 = vector.load %arg2[%c0_1, %c0_2] : memref<16x128xf32, #tpu.memory_space<vmem>>, vector<16x128xf32>
    %cst = arith.constant dense<0.000000e+00> : vector<8x128xf32>
    %2 = tpu.matmul %0, %1, %cst {dimension_numbers = #tpu.dot_dimension_numbers<[1], [0], [0], [1], [0, 0, 1, 1], [], []>} : vector<8x16xf32>, vector<16x128xf32>, vector<8x128xf32> -> vector<8x128xf32>
    %cst_3 = arith.constant 0.00999999977 : f32
    %3 = vector.broadcast %cst_3 : f32 to vector<8x128xf32>
    %4 = arith.mulf %3, %2 : vector<8x128xf32>
    %5 = arith.maximumf %2, %4 : vector<8x128xf32>
    %c0_4 = arith.constant 0 : index
    %c0_5 = arith.constant 0 : index
    %6 = vector.load %arg3[%c0_4, %c0_5] : memref<128x128xf32, #tpu.memory_space<vmem>>, vector<128x128xf32>
    %cst_6 = arith.constant dense<0.000000e+00> : vector<8x128xf32>
    %7 = tpu.matmul %5, %6, %cst_6 {dimension_numbers = #tpu.dot_dimension_numbers<[1], [0], [0], [1], [0, 0, 1, 1], [], []>} : vector<8x128xf32>, vector<128x128xf32>, vector<8x128xf32> -> vector<8x128xf32>
    %c0_7 = arith.constant 0 : index
    %c0_8 = arith.constant 0 : index
    %8 = vector.load %arg4[%c0_7, %c0_8] : memref<1x128xf32, #tpu.memory_space<vmem>>, vector<1x128xf32>
    %9 = vector.broadcast %8 : vector<1x128xf32> to vector<8x128xf32>
    %10 = arith.addf %7, %9 : vector<8x128xf32>
    %cst_9 = arith.constant 0.00999999977 : f32
    %11 = vector.broadcast %cst_9 : f32 to vector<8x128xf32>
    %12 = arith.mulf %11, %10 : vector<8x128xf32>
    %13 = arith.maximumf %10, %12 : vector<8x128xf32>
    %c0_10 = arith.constant 0 : index
    %c0_11 = arith.constant 0 : index
    %14 = vector.load %arg5[%c0_10, %c0_11] : memref<128x128xf32, #tpu.memory_space<vmem>>, vector<128x128xf32>
    %cst_12 = arith.constant dense<0.000000e+00> : vector<8x128xf32>
    %15 = tpu.matmul %13, %14, %cst_12 {dimension_numbers = #tpu.dot_dimension_numbers<[1], [0], [0], [1], [0, 0, 1, 1], [], []>} : vector<8x128xf32>, vector<128x128xf32>, vector<8x128xf32> -> vector<8x128xf32>
    %c0_13 = arith.constant 0 : index
    %c0_14 = arith.constant 0 : index
    %16 = vector.load %arg6[%c0_13, %c0_14] : memref<1x128xf32, #tpu.memory_space<vmem>>, vector<1x128xf32>
    %17 = vector.broadcast %16 : vector<1x128xf32> to vector<8x128xf32>
    %18 = arith.addf %15, %17 : vector<8x128xf32>
    %cst_15 = arith.constant 0.00999999977 : f32
    %19 = vector.broadcast %cst_15 : f32 to vector<8x128xf32>
    %20 = arith.mulf %19, %18 : vector<8x128xf32>
    %21 = arith.maximumf %18, %20 : vector<8x128xf32>
    %c0_16 = arith.constant 0 : index
    %c0_17 = arith.constant 0 : index
    %22 = vector.load %arg7[%c0_16, %c0_17] : memref<128x128xf32, #tpu.memory_space<vmem>>, vector<128x128xf32>
    %cst_18 = arith.constant dense<0.000000e+00> : vector<8x128xf32>
    %23 = tpu.matmul %21, %22, %cst_18 {dimension_numbers = #tpu.dot_dimension_numbers<[1], [0], [0], [1], [0, 0, 1, 1], [], []>} : vector<8x128xf32>, vector<128x128xf32>, vector<8x128xf32> -> vector<8x128xf32>
    %c0_19 = arith.constant 0 : index
    %c0_20 = arith.constant 0 : index
    %24 = vector.load %arg8[%c0_19, %c0_20] : memref<1x128xf32, #tpu.memory_space<vmem>>, vector<1x128xf32>
    %25 = vector.broadcast %24 : vector<1x128xf32> to vector<8x128xf32>
    %26 = arith.addf %23, %25 : vector<8x128xf32>
    %cst_21 = arith.constant 0.00999999977 : f32
    %27 = vector.broadcast %cst_21 : f32 to vector<8x128xf32>
    %28 = arith.mulf %27, %26 : vector<8x128xf32>
    %29 = arith.maximumf %26, %28 : vector<8x128xf32>
    %c0_22 = arith.constant 0 : index
    %c0_23 = arith.constant 0 : index
    %30 = vector.load %arg9[%c0_22, %c0_23] : memref<128x128xf32, #tpu.memory_space<vmem>>, vector<128x128xf32>
    %cst_24 = arith.constant dense<0.000000e+00> : vector<8x128xf32>
    %31 = tpu.matmul %29, %30, %cst_24 {dimension_numbers = #tpu.dot_dimension_numbers<[1], [0], [0], [1], [0, 0, 1, 1], [], []>} : vector<8x128xf32>, vector<128x128xf32>, vector<8x128xf32> -> vector<8x128xf32>
    %c0_25 = arith.constant 0 : index
    %c0_26 = arith.constant 0 : index
    %32 = vector.load %arg10[%c0_25, %c0_26] : memref<1x128xf32, #tpu.memory_space<vmem>>, vector<1x128xf32>
    %33 = vector.broadcast %32 : vector<1x128xf32> to vector<8x128xf32>
    %34 = arith.addf %31, %33 : vector<8x128xf32>
    %cst_27 = arith.constant 0.00999999977 : f32
    %35 = vector.broadcast %cst_27 : f32 to vector<8x128xf32>
    %36 = arith.mulf %35, %34 : vector<8x128xf32>
    %37 = arith.maximumf %34, %36 : vector<8x128xf32>
    %c0_28 = arith.constant 0 : index
    %c0_29 = arith.constant 0 : index
    %38 = vector.load %arg11[%c0_28, %c0_29] : memref<8x128xf32, #tpu.memory_space<vmem>>, vector<8x128xf32>
    tpu.vector_store %arg11[%c0_28, %c0_29], %37 {strides = array<i32>} : memref<8x128xf32, #tpu.memory_space<vmem>>, vector<8x128xf32>,
    return
  }
  func.func @transform_0(%arg0: i32) -> (i32, i32) {
    %c0_i32 = arith.constant 0 : i32
    %c0_i32_0 = arith.constant 0 : i32
    return %arg0, %c0_i32 : i32, i32
  }
  func.func @transform_1(%arg0: i32) -> (i32, i32) {
    %c0_i32 = arith.constant 0 : i32
    %c0_i32_0 = arith.constant 0 : i32
    %c0_i32_1 = arith.constant 0 : i32
    return %c0_i32, %c0_i32_0 : i32, i32
  }
  func.func @transform_2(%arg0: i32) -> (i32, i32) {
    %c0_i32 = arith.constant 0 : i32
    %c0_i32_0 = arith.constant 0 : i32
    %c0_i32_1 = arith.constant 0 : i32
    return %c0_i32, %c0_i32_0 : i32, i32
  }
  func.func @transform_3(%arg0: i32) -> (i32, i32) {
    %c0_i32 = arith.constant 0 : i32
    %c0_i32_0 = arith.constant 0 : i32
    %c0_i32_1 = arith.constant 0 : i32
    return %c0_i32, %c0_i32_0 : i32, i32
  }
  func.func @transform_4(%arg0: i32) -> (i32, i32) {
    %c0_i32 = arith.constant 0 : i32
    %c0_i32_0 = arith.constant 0 : i32
    %c0_i32_1 = arith.constant 0 : i32
    return %c0_i32, %c0_i32_0 : i32, i32
  }
  func.func @transform_5(%arg0: i32) -> (i32, i32) {
    %c0_i32 = arith.constant 0 : i32
    %c0_i32_0 = arith.constant 0 : i32
    %c0_i32_1 = arith.constant 0 : i32
    return %c0_i32, %c0_i32_0 : i32, i32
  }
  func.func @transform_6(%arg0: i32) -> (i32, i32) {
    %c0_i32 = arith.constant 0 : i32
    %c0_i32_0 = arith.constant 0 : i32
    %c0_i32_1 = arith.constant 0 : i32
    return %c0_i32, %c0_i32_0 : i32, i32
  }
  func.func @transform_7(%arg0: i32) -> (i32, i32) {
    %c0_i32 = arith.constant 0 : i32
    %c0_i32_0 = arith.constant 0 : i32
    %c0_i32_1 = arith.constant 0 : i32
    return %c0_i32, %c0_i32_0 : i32, i32
  }
  func.func @transform_8(%arg0: i32) -> (i32, i32) {
    %c0_i32 = arith.constant 0 : i32
    %c0_i32_0 = arith.constant 0 : i32
    %c0_i32_1 = arith.constant 0 : i32
    return %c0_i32, %c0_i32_0 : i32, i32
  }
  func.func @transform_9(%arg0: i32) -> (i32, i32) {
    %c0_i32 = arith.constant 0 : i32
    %c0_i32_0 = arith.constant 0 : i32
    %c0_i32_1 = arith.constant 0 : i32
    return %c0_i32, %c0_i32_0 : i32, i32
  }
  func.func @transform_10(%arg0: i32) -> (i32, i32) {
    %c0_i32 = arith.constant 0 : i32
    %c0_i32_0 = arith.constant 0 : i32
    return %arg0, %c0_i32 : i32, i32
  }
}

</mosaic_0001>

<llo_original>
// kernel: tpu_custom_call.1
$region0: #{tpu_custom_call.1}
  #allocation0 [shape = 'u32[]', space=smem, size = 0x4, offset = 0x4, fixed_abs, tag = 'smem constant byte address 0x4 - core index']
  #allocation1 [shape = 'u32[144,128]{1,0:T(1,128)}', space=vmem, size = 0x12000, scoped, tag = 'internal scratch']
  %s0 = inlined_call_operand.hbm [shape: f32[8,16], index: 0, kind: input, shape index: {}]
  %s1 = inlined_call_operand.hbm [shape: f32[16,128], index: 1, kind: input, shape index: {}]
  %s2 = inlined_call_operand.hbm [shape: f32[128,128], index: 2, kind: input, shape index: {}]
  %s3 = inlined_call_operand.vmem [shape: f32[1,128], index: 3, kind: input, shape index: {}]
  %s4 = inlined_call_operand.hbm [shape: f32[128,128], index: 4, kind: input, shape index: {}]
  %s5 = inlined_call_operand.vmem [shape: f32[1,128], index: 5, kind: input, shape index: {}]
  %s6 = inlined_call_operand.hbm [shape: f32[128,128], index: 6, kind: input, shape index: {}]
  %s7 = inlined_call_operand.vmem [shape: f32[1,128], index: 7, kind: input, shape index: {}]
  %s8 = inlined_call_operand.hbm [shape: f32[128,128], index: 8, kind: input, shape index: {}]
  %s9 = inlined_call_operand.vmem [shape: f32[1,128], index: 9, kind: input, shape index: {}]
  %s10 = inlined_call_operand.hbm [shape: f32[8,128], index: 10, kind: output, shape index: {}]
  %s11 = sld [smem:[#allocation0]]
  $region74: #{tpu_custom_call.1} parent=0
    _
  %s13 = ssub.s32 1, %s11
  %s14 = scalar_select 0, %s13, %s11
  $region1: #{tpu_custom_call.1} parent=0
    #allocation2 [shape = 'u8[4096]{0}', space=vmem, size = 0x1000, scoped, tag = 'input window, operand 0, single buffered']
    #allocation3 [shape = 's32[1]{0}', space=sflag, size = 0x4, scoped, tag = 'scoped memory for tpu_custom_call.1']
    #allocation4 [shape = 's32[1]{0}', space=sflag, size = 0x4, scoped, tag = 'scoped memory for tpu_custom_call.1']
    #allocation5 [shape = 'u8[8192]{0}', space=vmem, size = 0x2000, scoped, tag = 'input window, operand 1, single buffered']
    #allocation6 [shape = 's32[1]{0}', space=sflag, size = 0x4, scoped, tag = 'scoped memory for tpu_custom_call.1']
    #allocation7 [shape = 'u8[65536]{0}', space=vmem, size = 0x10000, scoped, tag = 'input window, operand 2, single buffered']
    #allocation8 [shape = 'u8[65536]{0}', space=vmem, size = 0x10000, scoped, tag = 'input window, operand 4, single buffered']
    #allocation9 [shape = 's32[1]{0}', space=sflag, size = 0x4, scoped, tag = 'scoped memory for tpu_custom_call.1']
    #allocation10 [shape = 'u8[65536]{0}', space=vmem, size = 0x10000, scoped, tag = 'input window, operand 6, single buffered']
    #allocation11 [shape = 'u8[65536]{0}', space=vmem, size = 0x10000, scoped, tag = 'input window, operand 8, single buffered']
    #allocation12 [shape = 's32[1]{0}', space=sflag, size = 0x4, scoped, tag = 'scoped memory for tpu_custom_call.1']
    #allocation13 [shape = 'u8[4096]{0}', space=vmem, size = 0x1000, scoped, tag = 'output window, operand 0, single buffered']
    %15 = vsyncpa [#allocation3], 0
    %16 = vsyncpa [#allocation6], 0
    %17 = vsyncpa [#allocation9], 0
    %18 = vsyncpa [#allocation12], 0
    %19 = vsyncpa [#allocation4], 0
    // Predicated region
    $region2: #{tpu_custom_call.1} parent=1 // pred_check
      _
    $region3: #{tpu_custom_call.1} parent=1 // pred_check_branch
      %21 = sbr.rel (0) target = $region5
    $region4: #{tpu_custom_call.1} parent=1 // pred_region
      %s23 = ssub.s32 128, 128
      %24 = vsyncadd [#allocation3], %s23
      %s26 = sshll.u32 [#allocation2], 4
      %s27 = int_to_ptr.vmem [resolvable:$true] %s26
      %29 = dma.hbm_to_vmem [thread:$0]  %s0, 128, %s27, [#allocation3]
    $region5: #{tpu_custom_call.1} parent=1 // pred_fallthru
      _
    // Predicated region
    $region6: #{tpu_custom_call.1} parent=1 // pred_check
      _
    $region7: #{tpu_custom_call.1} parent=1 // pred_check_branch
      %31 = sbr.rel (0) target = $region9
    $region8: #{tpu_custom_call.1} parent=1 // pred_region
      %s33 = ssub.s32 256, 256
      %34 = vsyncadd [#allocation6], %s33
      %s35 = sshll.u32 [#allocation5], 4
      %s36 = int_to_ptr.vmem [resolvable:$true] %s35
      %41 = dma.hbm_to_vmem [thread:$0]  %s1, 256, %s36, [#allocation6], 128, 128, 8
    $region9: #{tpu_custom_call.1} parent=1 // pred_fallthru
      _
    // Predicated region
    $region10: #{tpu_custom_call.1} parent=1 // pred_check
      _
    $region11: #{tpu_custom_call.1} parent=1 // pred_check_branch
      %43 = sbr.rel (0) target = $region13
    $region12: #{tpu_custom_call.1} parent=1 // pred_region
      %s45 = ssub.s32 2048, 2048
      %46 = vsyncadd [#allocation6], %s45
      %s47 = sshll.u32 [#allocation7], 4
      %s48 = int_to_ptr.vmem [resolvable:$true] %s47
      %53 = dma.hbm_to_vmem [thread:$0]  %s2, 2048, %s48, [#allocation6], 128, 128, 8
    $region13: #{tpu_custom_call.1} parent=1 // pred_fallthru
      _
    // Predicated region
    $region14: #{tpu_custom_call.1} parent=1 // pred_check
      _
    $region15: #{tpu_custom_call.1} parent=1 // pred_check_branch
      %55 = sbr.rel (0) target = $region17
    $region16: #{tpu_custom_call.1} parent=1 // pred_region
      _
    $region17: #{tpu_custom_call.1} parent=1 // pred_fallthru
      _
    // Predicated region
    $region18: #{tpu_custom_call.1} parent=1 // pred_check
      _
    $region19: #{tpu_custom_call.1} parent=1 // pred_check_branch
      %57 = sbr.rel (0) target = $region21
    $region20: #{tpu_custom_call.1} parent=1 // pred_region
      %s59 = ssub.s32 2048, 2048
      %60 = vsyncadd [#allocation9], %s59
      %s61 = sshll.u32 [#allocation8], 4
      %s62 = int_to_ptr.vmem [resolvable:$true] %s61
      %67 = dma.hbm_to_vmem [thread:$0]  %s4, 2048, %s62, [#allocation9], 128, 128, 8
    $region21: #{tpu_custom_call.1} parent=1 // pred_fallthru
      _
    // Predicated region
    $region22: #{tpu_custom_call.1} parent=1 // pred_check
      _
    $region23: #{tpu_custom_call.1} parent=1 // pred_check_branch
      %69 = sbr.rel (0) target = $region25
    $region24: #{tpu_custom_call.1} parent=1 // pred_region
      _
    $region25: #{tpu_custom_call.1} parent=1 // pred_fallthru
      _
    // Predicated region
    $region26: #{tpu_custom_call.1} parent=1 // pred_check
      _
    $region27: #{tpu_custom_call.1} parent=1 // pred_check_branch
      %71 = sbr.rel (0) target = $region29
    $region28: #{tpu_custom_call.1} parent=1 // pred_region
      %s73 = ssub.s32 2048, 2048
      %74 = vsyncadd [#allocation9], %s73
      %s75 = sshll.u32 [#allocation10], 4
      %s76 = int_to_ptr.vmem [resolvable:$true] %s75
      %81 = dma.hbm_to_vmem [thread:$0]  %s6, 2048, %s76, [#allocation9], 128, 128, 8
    $region29: #{tpu_custom_call.1} parent=1 // pred_fallthru
      _
    // Predicated region
    $region30: #{tpu_custom_call.1} parent=1 // pred_check
      _
    $region31: #{tpu_custom_call.1} parent=1 // pred_check_branch
      %83 = sbr.rel (0) target = $region33
    $region32: #{tpu_custom_call.1} parent=1 // pred_region
      _
    $region33: #{tpu_custom_call.1} parent=1 // pred_fallthru
      _
    // Predicated region
    $region34: #{tpu_custom_call.1} parent=1 // pred_check
      _
    $region35: #{tpu_custom_call.1} parent=1 // pred_check_branch
      %85 = sbr.rel (0) target = $region37
    $region36: #{tpu_custom_call.1} parent=1 // pred_region
      %s87 = ssub.s32 2048, 2048
      %88 = vsyncadd [#allocation12], %s87
      %s89 = sshll.u32 [#allocation11], 4
      %s90 = int_to_ptr.vmem [resolvable:$true] %s89
      %95 = dma.hbm_to_vmem [thread:$0]  %s8, 2048, %s90, [#allocation12], 128, 128, 8
    $region37: #{tpu_custom_call.1} parent=1 // pred_fallthru
      _
    // Predicated region
    $region38: #{tpu_custom_call.1} parent=1 // pred_check
      _
    $region39: #{tpu_custom_call.1} parent=1 // pred_check_branch
      %97 = sbr.rel (0) target = $region41
    $region40: #{tpu_custom_call.1} parent=1 // pred_region
      _
    $region41: #{tpu_custom_call.1} parent=1 // pred_fallthru
      _
    // Predicated region
    $region42: #{tpu_custom_call.1} parent=1 // pred_check
      _
    $region43: #{tpu_custom_call.1} parent=1 // pred_check_branch
      %99 = sbr.rel (0) target = $region45
    $region44: #{tpu_custom_call.1} parent=1 // pred_region
      %100 = dma.done [#allocation3], 128
    $region45: #{tpu_custom_call.1} parent=1 // pred_fallthru
      _
    // Predicated region
    $region46: #{tpu_custom_call.1} parent=1 // pred_check
      _
    $region47: #{tpu_custom_call.1} parent=1 // pred_check_branch
      %102 = sbr.rel (0) target = $region49
    $region48: #{tpu_custom_call.1} parent=1 // pred_region
      %103 = dma.done [#allocation6], 256
    $region49: #{tpu_custom_call.1} parent=1 // pred_fallthru
      _
    // Predicated region
    $region50: #{tpu_custom_call.1} parent=1 // pred_check
      _
    $region51: #{tpu_custom_call.1} parent=1 // pred_check_branch
      %105 = sbr.rel (0) target = $region53
    $region52: #{tpu_custom_call.1} parent=1 // pred_region
      %106 = dma.done [#allocation6], 2048
    $region53: #{tpu_custom_call.1} parent=1 // pred_fallthru
      _
    // Predicated region
    $region54: #{tpu_custom_call.1} parent=1 // pred_check
      _
    $region55: #{tpu_custom_call.1} parent=1 // pred_check_branch
      %108 = sbr.rel (0) target = $region57
    $region56: #{tpu_custom_call.1} parent=1 // pred_region
      %109 = dma.done [#allocation9], 2048
    $region57: #{tpu_custom_call.1} parent=1 // pred_fallthru
      _
    // Predicated region
    $region58: #{tpu_custom_call.1} parent=1 // pred_check
      _
    $region59: #{tpu_custom_call.1} parent=1 // pred_check_branch
      %111 = sbr.rel (0) target = $region61
    $region60: #{tpu_custom_call.1} parent=1 // pred_region
      %112 = dma.done [#allocation9], 2048
    $region61: #{tpu_custom_call.1} parent=1 // pred_fallthru
      _
    // Predicated region
    $region62: #{tpu_custom_call.1} parent=1 // pred_check
      _
    $region63: #{tpu_custom_call.1} parent=1 // pred_check_branch
      %114 = sbr.rel (0) target = $region65
    $region64: #{tpu_custom_call.1} parent=1 // pred_region
      %115 = dma.done [#allocation12], 2048
    $region65: #{tpu_custom_call.1} parent=1 // pred_fallthru
      _
    %v116 = vld [vmem:[#allocation2] sm:$0xff]
    %v117 = vld [vmem:[#allocation5] sm:$0xff]
    %v118 = vld [vmem:[#allocation5 + $0x8] sm:$0xff]
    %vm119 = vcmask 130048
    %v121 = vsel %vm119, %v116, 0
    %123 = vmatprep.subr.mxu0 0.0
    %124 = vmatpush1.msra.mxu0 0.0
    %125 = vmatprep.subr.mxu0 0.0
    %126 = vmatpush1.msra.mxu0 0.0
    %127 = vmatprep.subr.mxu0 0.0
    %128 = vmatpush1.msra.mxu0 0.0
    %129 = vmatprep.subr.mxu0 0.0
    %130 = vmatpush1.msra.mxu0 0.0
    %131 = vmatprep.subr.mxu0 0.0
    %132 = vmatpush1.msra.mxu0 0.0
    %133 = vmatprep.subr.mxu0 0.0
    %134 = vmatpush1.msra.mxu0 0.0
    %135 = vmatprep.subr.mxu0 0.0
    %136 = vmatpush1.msra.mxu0 0.0
    %137 = vmatprep.subr.mxu0 0.0
    %138 = vmatpush1.msra.mxu0 0.0
    %139 = vmatprep.subr.mxu0 0.0
    %140 = vmatpush1.msra.mxu0 0.0
    %141 = vmatprep.subr.mxu0 0.0
    %142 = vmatpush1.msra.mxu0 0.0
    %143 = vmatprep.subr.mxu0 0.0
    %144 = vmatpush1.msra.mxu0 0.0
    %145 = vmatprep.subr.mxu0 0.0
    %146 = vmatpush1.msra.mxu0 0.0
    %147 = vmatprep.subr.mxu0 0.0
    %148 = vmatpush1.msra.mxu0 0.0
    %149 = vmatprep.subr.mxu0 0.0
    %150 = vmatpush1.msra.mxu0 0.0
    %151 = vmatprep.subr.mxu0 0.0
    %152 = vmatpush1.msra.mxu0 %v118
    %153 = vmatprep.subr.mxu0 0.0
    %154 = vmatpush1.msra.mxu0 %v117
    %155 = vmatprep.subr.mxu0 0.0
    %156 = vmatpush2.msra.mxu0 0.0
    %157 = vmatprep.subr.mxu0 0.0
    %158 = vmatpush2.msra.mxu0 0.0
    %159 = vmatprep.subr.mxu0 0.0
    %160 = vmatpush2.msra.mxu0 0.0
    %161 = vmatprep.subr.mxu0 0.0
    %162 = vmatpush2.msra.mxu0 0.0
    %163 = vmatprep.subr.mxu0 0.0
    %164 = vmatpush2.msra.mxu0 0.0
    %165 = vmatprep.subr.mxu0 0.0
    %166 = vmatpush2.msra.mxu0 0.0
    %167 = vmatprep.subr.mxu0 0.0
    %168 = vmatpush2.msra.mxu0 0.0
    %169 = vmatprep.subr.mxu0 0.0
    %170 = vmatpush2.msra.mxu0 0.0
    %171 = vmatprep.subr.mxu0 0.0
    %172 = vmatpush2.msra.mxu0 0.0
    %173 = vmatprep.subr.mxu0 0.0
    %174 = vmatpush2.msra.mxu0 0.0
    %175 = vmatprep.subr.mxu0 0.0
    %176 = vmatpush2.msra.mxu0 0.0
    %177 = vmatprep.subr.mxu0 0.0
    %178 = vmatpush2.msra.mxu0 0.0
    %179 = vmatprep.subr.mxu0 0.0
    %180 = vmatpush2.msra.mxu0 0.0
    %181 = vmatprep.subr.mxu0 0.0
    %182 = vmatpush2.msra.mxu0 0.0
    %183 = vmatprep.subr.mxu0 0.0
    %184 = vmatpush2.msra.mxu0 0.0
    %185 = vmatprep.subr.mxu0 0.0
    %186 = vmatpush2.msra.mxu0 0.0
    %187 = vmatprep.mubr.f32.mxu0 0.0
    %188 = vmatmul.mubr.f32.gmra.mxu0 %v121
    %v189 = vpop.f32.mrf.mxu0
    %v190 = vadd.f32 0.0, %v189
    %v191 = vpop.f32.mrf.mxu0
    %192 = vdwg.mxu0
    %v193 = vmul.f32 %v190, 0.01
    %v194 = vmax.f32 %v190, %v193
    %v195 = vld [vmem:[#allocation7] sm:$0xff]
    %v196 = vld [vmem:[#allocation7 + $0x8] sm:$0xff]
    %v197 = vld [vmem:[#allocation7 + $0x10] sm:$0xff]
    %v198 = vld [vmem:[#allocation7 + $0x18] sm:$0xff]
    %v199 = vld [vmem:[#allocation7 + $0x20] sm:$0xff]
    %v200 = vld [vmem:[#allocation7 + $0x28] sm:$0xff]
    %v201 = vld [vmem:[#allocation7 + $0x30] sm:$0xff]
    %v202 = vld [vmem:[#allocation7 + $0x38] sm:$0xff]
    %v203 = vld [vmem:[#allocation7 + $0x40] sm:$0xff]
    %v204 = vld [vmem:[#allocation7 + $0x48] sm:$0xff]
    %v205 = vld [vmem:[#allocation7 + $0x50] sm:$0xff]
    %v206 = vld [vmem:[#allocation7 + $0x58] sm:$0xff]
    %v207 = vld [vmem:[#allocation7 + $0x60] sm:$0xff]
    %v208 = vld [vmem:[#allocation7 + $0x68] sm:$0xff]
    %v209 = vld [vmem:[#allocation7 + $0x70] sm:$0xff]
    %v210 = vld [vmem:[#allocation7 + $0x78] sm:$0xff]
    %v211 = vld [vmem:[%s3] sm:$0x1]
    %v213 = vlaneseq
    %v214 = vshrl.u32 %v213, 7
    %v215 = vsub.s32 0, %v214
    %v216 = vrot.slane %v211, %v215
    %218 = vmatprep.subr.mxu0 0.0
    %219 = vmatpush1.msra.mxu0 %v210
    %220 = vmatprep.subr.mxu0 0.0
    %221 = vmatpush1.msra.mxu0 %v209
    %222 = vmatprep.subr.mxu0 0.0
    %223 = vmatpush1.msra.mxu0 %v208
    %224 = vmatprep.subr.mxu0 0.0
    %225 = vmatpush1.msra.mxu0 %v207
    %226 = vmatprep.subr.mxu0 0.0
    %227 = vmatpush1.msra.mxu0 %v206
    %228 = vmatprep.subr.mxu0 0.0
    %229 = vmatpush1.msra.mxu0 %v205
    %230 = vmatprep.subr.mxu0 0.0
    %231 = vmatpush1.msra.mxu0 %v204
    %232 = vmatprep.subr.mxu0 0.0
    %233 = vmatpush1.msra.mxu0 %v203
    %234 = vmatprep.subr.mxu0 0.0
    %235 = vmatpush1.msra.mxu0 %v202
    %236 = vmatprep.subr.mxu0 0.0
    %237 = vmatpush1.msra.mxu0 %v201
    %238 = vmatprep.subr.mxu0 0.0
    %239 = vmatpush1.msra.mxu0 %v200
    %240 = vmatprep.subr.mxu0 0.0
    %241 = vmatpush1.msra.mxu0 %v199
    %242 = vmatprep.subr.mxu0 0.0
    %243 = vmatpush1.msra.mxu0 %v198
    %244 = vmatprep.subr.mxu0 0.0
    %245 = vmatpush1.msra.mxu0 %v197
    %246 = vmatprep.subr.mxu0 0.0
    %247 = vmatpush1.msra.mxu0 %v196
    %248 = vmatprep.subr.mxu0 0.0
    %249 = vmatpush1.msra.mxu0 %v195
    %250 = vmatprep.subr.mxu0 0.0
    %251 = vmatpush2.msra.mxu0 0.0
    %252 = vmatprep.subr.mxu0 0.0
    %253 = vmatpush2.msra.mxu0 0.0
    %254 = vmatprep.subr.mxu0 0.0
    %255 = vmatpush2.msra.mxu0 0.0
    %256 = vmatprep.subr.mxu0 0.0
    %257 = vmatpush2.msra.mxu0 0.0
    %258 = vmatprep.subr.mxu0 0.0
    %259 = vmatpush2.msra.mxu0 0.0
    %260 = vmatprep.subr.mxu0 0.0
    %261 = vmatpush2.msra.mxu0 0.0
    %262 = vmatprep.subr.mxu0 0.0
    %263 = vmatpush2.msra.mxu0 0.0
    %264 = vmatprep.subr.mxu0 0.0
    %265 = vmatpush2.msra.mxu0 0.0
    %266 = vmatprep.subr.mxu0 0.0
    %267 = vmatpush2.msra.mxu0 0.0
    %268 = vmatprep.subr.mxu0 0.0
    %269 = vmatpush2.msra.mxu0 0.0
    %270 = vmatprep.subr.mxu0 0.0
    %271 = vmatpush2.msra.mxu0 0.0
    %272 = vmatprep.subr.mxu0 0.0
    %273 = vmatpush2.msra.mxu0 0.0
    %274 = vmatprep.subr.mxu0 0.0
    %275 = vmatpush2.msra.mxu0 0.0
    %276 = vmatprep.subr.mxu0 0.0
    %277 = vmatpush2.msra.mxu0 0.0
    %278 = vmatprep.subr.mxu0 0.0
    %279 = vmatpush2.msra.mxu0 0.0
    %280 = vmatprep.subr.mxu0 0.0
    %281 = vmatpush2.msra.mxu0 0.0
    %282 = vmatprep.mubr.f32.mxu0 0.0
    %283 = vmatmul.mubr.f32.gmra.mxu0 %v194
    %v284 = vpop.f32.mrf.mxu0
    %v285 = vadd.f32 %v216, %v284
    %v286 = vpop.f32.mrf.mxu0
    %287 = vdwg.mxu0
    %v288 = vmul.f32 %v285, 0.01
    %v289 = vmax.f32 %v285, %v288
    %v290 = vld [vmem:[#allocation8] sm:$0xff]
    %v291 = vld [vmem:[#allocation8 + $0x8] sm:$0xff]
    %v292 = vld [vmem:[#allocation8 + $0x10] sm:$0xff]
    %v293 = vld [vmem:[#allocation8 + $0x18] sm:$0xff]
    %v294 = vld [vmem:[#allocation8 + $0x20] sm:$0xff]
    %v295 = vld [vmem:[#allocation8 + $0x28] sm:$0xff]
    %v296 = vld [vmem:[#allocation8 + $0x30] sm:$0xff]
    %v297 = vld [vmem:[#allocation8 + $0x38] sm:$0xff]
    %v298 = vld [vmem:[#allocation8 + $0x40] sm:$0xff]
    %v299 = vld [vmem:[#allocation8 + $0x48] sm:$0xff]
    %v300 = vld [vmem:[#allocation8 + $0x50] sm:$0xff]
    %v301 = vld [vmem:[#allocation8 + $0x58] sm:$0xff]
    %v302 = vld [vmem:[#allocation8 + $0x60] sm:$0xff]
    %v303 = vld [vmem:[#allocation8 + $0x68] sm:$0xff]
    %v304 = vld [vmem:[#allocation8 + $0x70] sm:$0xff]
    %v305 = vld [vmem:[#allocation8 + $0x78] sm:$0xff]
    %v306 = vld [vmem:[%s5] sm:$0x1]
    %v308 = vlaneseq
    %v309 = vshrl.u32 %v308, 7
    %v310 = vsub.s32 0, %v309
    %v311 = vrot.slane %v306, %v310
    %313 = vmatprep.subr.mxu0 0.0
    %314 = vmatpush1.msra.mxu0 %v305
    %315 = vmatprep.subr.mxu0 0.0
    %316 = vmatpush1.msra.mxu0 %v304
    %317 = vmatprep.subr.mxu0 0.0
    %318 = vmatpush1.msra.mxu0 %v303
    %319 = vmatprep.subr.mxu0 0.0
    %320 = vmatpush1.msra.mxu0 %v302
    %321 = vmatprep.subr.mxu0 0.0
    %322 = vmatpush1.msra.mxu0 %v301
    %323 = vmatprep.subr.mxu0 0.0
    %324 = vmatpush1.msra.mxu0 %v300
    %325 = vmatprep.subr.mxu0 0.0
    %326 = vmatpush1.msra.mxu0 %v299
    %327 = vmatprep.subr.mxu0 0.0
    %328 = vmatpush1.msra.mxu0 %v298
    %329 = vmatprep.subr.mxu0 0.0
    %330 = vmatpush1.msra.mxu0 %v297
    %331 = vmatprep.subr.mxu0 0.0
    %332 = vmatpush1.msra.mxu0 %v296
    %333 = vmatprep.subr.mxu0 0.0
    %334 = vmatpush1.msra.mxu0 %v295
    %335 = vmatprep.subr.mxu0 0.0
    %336 = vmatpush1.msra.mxu0 %v294
    %337 = vmatprep.subr.mxu0 0.0
    %338 = vmatpush1.msra.mxu0 %v293
    %339 = vmatprep.subr.mxu0 0.0
    %340 = vmatpush1.msra.mxu0 %v292
    %341 = vmatprep.subr.mxu0 0.0
    %342 = vmatpush1.msra.mxu0 %v291
    %343 = vmatprep.subr.mxu0 0.0
    %344 = vmatpush1.msra.mxu0 %v290
    %345 = vmatprep.subr.mxu0 0.0
    %346 = vmatpush2.msra.mxu0 0.0
    %347 = vmatprep.subr.mxu0 0.0
    %348 = vmatpush2.msra.mxu0 0.0
    %349 = vmatprep.subr.mxu0 0.0
    %350 = vmatpush2.msra.mxu0 0.0
    %351 = vmatprep.subr.mxu0 0.0
    %352 = vmatpush2.msra.mxu0 0.0
    %353 = vmatprep.subr.mxu0 0.0
    %354 = vmatpush2.msra.mxu0 0.0
    %355 = vmatprep.subr.mxu0 0.0
    %356 = vmatpush2.msra.mxu0 0.0
    %357 = vmatprep.subr.mxu0 0.0
    %358 = vmatpush2.msra.mxu0 0.0
    %359 = vmatprep.subr.mxu0 0.0
    %360 = vmatpush2.msra.mxu0 0.0
    %361 = vmatprep.subr.mxu0 0.0
    %362 = vmatpush2.msra.mxu0 0.0
    %363 = vmatprep.subr.mxu0 0.0
    %364 = vmatpush2.msra.mxu0 0.0
    %365 = vmatprep.subr.mxu0 0.0
    %366 = vmatpush2.msra.mxu0 0.0
    %367 = vmatprep.subr.mxu0 0.0
    %368 = vmatpush2.msra.mxu0 0.0
    %369 = vmatprep.subr.mxu0 0.0
    %370 = vmatpush2.msra.mxu0 0.0
    %371 = vmatprep.subr.mxu0 0.0
    %372 = vmatpush2.msra.mxu0 0.0
    %373 = vmatprep.subr.mxu0 0.0
    %374 = vmatpush2.msra.mxu0 0.0
    %375 = vmatprep.subr.mxu0 0.0
    %376 = vmatpush2.msra.mxu0 0.0
    %377 = vmatprep.mubr.f32.mxu0 0.0
    %378 = vmatmul.mubr.f32.gmra.mxu0 %v289
    %v379 = vpop.f32.mrf.mxu0
    %v380 = vadd.f32 %v311, %v379
    %v381 = vpop.f32.mrf.mxu0
    %382 = vdwg.mxu0
    %v383 = vmul.f32 %v380, 0.01
    %v384 = vmax.f32 %v380, %v383
    %v385 = vld [vmem:[#allocation10] sm:$0xff]
    %v386 = vld [vmem:[#allocation10 + $0x8] sm:$0xff]
    %v387 = vld [vmem:[#allocation10 + $0x10] sm:$0xff]
    %v388 = vld [vmem:[#allocation10 + $0x18] sm:$0xff]
    %v389 = vld [vmem:[#allocation10 + $0x20] sm:$0xff]
    %v390 = vld [vmem:[#allocation10 + $0x28] sm:$0xff]
    %v391 = vld [vmem:[#allocation10 + $0x30] sm:$0xff]
    %v392 = vld [vmem:[#allocation10 + $0x38] sm:$0xff]
    %v393 = vld [vmem:[#allocation10 + $0x40] sm:$0xff]
    %v394 = vld [vmem:[#allocation10 + $0x48] sm:$0xff]
    %v395 = vld [vmem:[#allocation10 + $0x50] sm:$0xff]
    %v396 = vld [vmem:[#allocation10 + $0x58] sm:$0xff]
    %v397 = vld [vmem:[#allocation10 + $0x60] sm:$0xff]
    %v398 = vld [vmem:[#allocation10 + $0x68] sm:$0xff]
    %v399 = vld [vmem:[#allocation10 + $0x70] sm:$0xff]
    %v400 = vld [vmem:[#allocation10 + $0x78] sm:$0xff]
    %v401 = vld [vmem:[%s7] sm:$0x1]
    %v403 = vlaneseq
    %v404 = vshrl.u32 %v403, 7
    %v405 = vsub.s32 0, %v404
    %v406 = vrot.slane %v401, %v405
    %408 = vmatprep.subr.mxu0 0.0
    %409 = vmatpush1.msra.mxu0 %v400
    %410 = vmatprep.subr.mxu0 0.0
    %411 = vmatpush1.msra.mxu0 %v399
    %412 = vmatprep.subr.mxu0 0.0
    %413 = vmatpush1.msra.mxu0 %v398
    %414 = vmatprep.subr.mxu0 0.0
    %415 = vmatpush1.msra.mxu0 %v397
    %416 = vmatprep.subr.mxu0 0.0
    %417 = vmatpush1.msra.mxu0 %v396
    %418 = vmatprep.subr.mxu0 0.0
    %419 = vmatpush1.msra.mxu0 %v395
    %420 = vmatprep.subr.mxu0 0.0
    %421 = vmatpush1.msra.mxu0 %v394
    %422 = vmatprep.subr.mxu0 0.0
    %423 = vmatpush1.msra.mxu0 %v393
    %424 = vmatprep.subr.mxu0 0.0
    %425 = vmatpush1.msra.mxu0 %v392
    %426 = vmatprep.subr.mxu0 0.0
    %427 = vmatpush1.msra.mxu0 %v391
    %428 = vmatprep.subr.mxu0 0.0
    %429 = vmatpush1.msra.mxu0 %v390
    %430 = vmatprep.subr.mxu0 0.0
    %431 = vmatpush1.msra.mxu0 %v389
    %432 = vmatprep.subr.mxu0 0.0
    %433 = vmatpush1.msra.mxu0 %v388
    %434 = vmatprep.subr.mxu0 0.0
    %435 = vmatpush1.msra.mxu0 %v387
    %436 = vmatprep.subr.mxu0 0.0
    %437 = vmatpush1.msra.mxu0 %v386
    %438 = vmatprep.subr.mxu0 0.0
    %439 = vmatpush1.msra.mxu0 %v385
    %440 = vmatprep.subr.mxu0 0.0
    %441 = vmatpush2.msra.mxu0 0.0
    %442 = vmatprep.subr.mxu0 0.0
    %443 = vmatpush2.msra.mxu0 0.0
    %444 = vmatprep.subr.mxu0 0.0
    %445 = vmatpush2.msra.mxu0 0.0
    %446 = vmatprep.subr.mxu0 0.0
    %447 = vmatpush2.msra.mxu0 0.0
    %448 = vmatprep.subr.mxu0 0.0
    %449 = vmatpush2.msra.mxu0 0.0
    %450 = vmatprep.subr.mxu0 0.0
    %451 = vmatpush2.msra.mxu0 0.0
    %452 = vmatprep.subr.mxu0 0.0
    %453 = vmatpush2.msra.mxu0 0.0
    %454 = vmatprep.subr.mxu0 0.0
    %455 = vmatpush2.msra.mxu0 0.0
    %456 = vmatprep.subr.mxu0 0.0
    %457 = vmatpush2.msra.mxu0 0.0
    %458 = vmatprep.subr.mxu0 0.0
    %459 = vmatpush2.msra.mxu0 0.0
    %460 = vmatprep.subr.mxu0 0.0
    %461 = vmatpush2.msra.mxu0 0.0
    %462 = vmatprep.subr.mxu0 0.0
    %463 = vmatpush2.msra.mxu0 0.0
    %464 = vmatprep.subr.mxu0 0.0
    %465 = vmatpush2.msra.mxu0 0.0
    %466 = vmatprep.subr.mxu0 0.0
    %467 = vmatpush2.msra.mxu0 0.0
    %468 = vmatprep.subr.mxu0 0.0
    %469 = vmatpush2.msra.mxu0 0.0
    %470 = vmatprep.subr.mxu0 0.0
    %471 = vmatpush2.msra.mxu0 0.0
    %472 = vmatprep.mubr.f32.mxu0 0.0
    %473 = vmatmul.mubr.f32.gmra.mxu0 %v384
    %v474 = vpop.f32.mrf.mxu0
    %v475 = vadd.f32 %v406, %v474
    %v476 = vpop.f32.mrf.mxu0
    %477 = vdwg.mxu0
    %v478 = vmul.f32 %v475, 0.01
    %v479 = vmax.f32 %v475, %v478
    %v480 = vld [vmem:[#allocation11] sm:$0xff]
    %v481 = vld [vmem:[#allocation11 + $0x8] sm:$0xff]
    %v482 = vld [vmem:[#allocation11 + $0x10] sm:$0xff]
    %v483 = vld [vmem:[#allocation11 + $0x18] sm:$0xff]
    %v484 = vld [vmem:[#allocation11 + $0x20] sm:$0xff]
    %v485 = vld [vmem:[#allocation11 + $0x28] sm:$0xff]
    %v486 = vld [vmem:[#allocation11 + $0x30] sm:$0xff]
    %v487 = vld [vmem:[#allocation11 + $0x38] sm:$0xff]
    %v488 = vld [vmem:[#allocation11 + $0x40] sm:$0xff]
    %v489 = vld [vmem:[#allocation11 + $0x48] sm:$0xff]
    %v490 = vld [vmem:[#allocation11 + $0x50] sm:$0xff]
    %v491 = vld [vmem:[#allocation11 + $0x58] sm:$0xff]
    %v492 = vld [vmem:[#allocation11 + $0x60] sm:$0xff]
    %v493 = vld [vmem:[#allocation11 + $0x68] sm:$0xff]
    %v494 = vld [vmem:[#allocation11 + $0x70] sm:$0xff]
    %v495 = vld [vmem:[#allocation11 + $0x78] sm:$0xff]
    %v496 = vld [vmem:[%s9] sm:$0x1]
    %v498 = vlaneseq
    %v499 = vshrl.u32 %v498, 7
    %v500 = vsub.s32 0, %v499
    %v501 = vrot.slane %v496, %v500
    %503 = vmatprep.subr.mxu0 0.0
    %504 = vmatpush1.msra.mxu0 %v495
    %505 = vmatprep.subr.mxu0 0.0
    %506 = vmatpush1.msra.mxu0 %v494
    %507 = vmatprep.subr.mxu0 0.0
    %508 = vmatpush1.msra.mxu0 %v493
    %509 = vmatprep.subr.mxu0 0.0
    %510 = vmatpush1.msra.mxu0 %v492
    %511 = vmatprep.subr.mxu0 0.0
    %512 = vmatpush1.msra.mxu0 %v491
    %513 = vmatprep.subr.mxu0 0.0
    %514 = vmatpush1.msra.mxu0 %v490
    %515 = vmatprep.subr.mxu0 0.0
    %516 = vmatpush1.msra.mxu0 %v489
    %517 = vmatprep.subr.mxu0 0.0
    %518 = vmatpush1.msra.mxu0 %v488
    %519 = vmatprep.subr.mxu0 0.0
    %520 = vmatpush1.msra.mxu0 %v487
    %521 = vmatprep.subr.mxu0 0.0
    %522 = vmatpush1.msra.mxu0 %v486
    %523 = vmatprep.subr.mxu0 0.0
    %524 = vmatpush1.msra.mxu0 %v485
    %525 = vmatprep.subr.mxu0 0.0
    %526 = vmatpush1.msra.mxu0 %v484
    %527 = vmatprep.subr.mxu0 0.0
    %528 = vmatpush1.msra.mxu0 %v483
    %529 = vmatprep.subr.mxu0 0.0
    %530 = vmatpush1.msra.mxu0 %v482
    %531 = vmatprep.subr.mxu0 0.0
    %532 = vmatpush1.msra.mxu0 %v481
    %533 = vmatprep.subr.mxu0 0.0
    %534 = vmatpush1.msra.mxu0 %v480
    %535 = vmatprep.subr.mxu0 0.0
    %536 = vmatpush2.msra.mxu0 0.0
    %537 = vmatprep.subr.mxu0 0.0
    %538 = vmatpush2.msra.mxu0 0.0
    %539 = vmatprep.subr.mxu0 0.0
    %540 = vmatpush2.msra.mxu0 0.0
    %541 = vmatprep.subr.mxu0 0.0
    %542 = vmatpush2.msra.mxu0 0.0
    %543 = vmatprep.subr.mxu0 0.0
    %544 = vmatpush2.msra.mxu0 0.0
    %545 = vmatprep.subr.mxu0 0.0
    %546 = vmatpush2.msra.mxu0 0.0
    %547 = vmatprep.subr.mxu0 0.0
    %548 = vmatpush2.msra.mxu0 0.0
    %549 = vmatprep.subr.mxu0 0.0
    %550 = vmatpush2.msra.mxu0 0.0
    %551 = vmatprep.subr.mxu0 0.0
    %552 = vmatpush2.msra.mxu0 0.0
    %553 = vmatprep.subr.mxu0 0.0
    %554 = vmatpush2.msra.mxu0 0.0
    %555 = vmatprep.subr.mxu0 0.0
    %556 = vmatpush2.msra.mxu0 0.0
    %557 = vmatprep.subr.mxu0 0.0
    %558 = vmatpush2.msra.mxu0 0.0
    %559 = vmatprep.subr.mxu0 0.0
    %560 = vmatpush2.msra.mxu0 0.0
    %561 = vmatprep.subr.mxu0 0.0
    %562 = vmatpush2.msra.mxu0 0.0
    %563 = vmatprep.subr.mxu0 0.0
    %564 = vmatpush2.msra.mxu0 0.0
    %565 = vmatprep.subr.mxu0 0.0
    %566 = vmatpush2.msra.mxu0 0.0
    %567 = vmatprep.mubr.f32.mxu0 0.0
    %568 = vmatmul.mubr.f32.gmra.mxu0 %v479
    %v569 = vpop.f32.mrf.mxu0
    %v570 = vadd.f32 %v501, %v569
    %v571 = vpop.f32.mrf.mxu0
    %572 = vdwg.mxu0
    %v573 = vmul.f32 %v570, 0.01
    %v574 = vmax.f32 %v570, %v573
    %575 = vst [vmem:[#allocation13] sm:$0xff] %v574
    // Predicated region
    $region66: #{tpu_custom_call.1} parent=1 // pred_check
      _
    $region67: #{tpu_custom_call.1} parent=1 // pred_check_branch
      %577 = sbr.rel (0) target = $region69
    $region68: #{tpu_custom_call.1} parent=1 // pred_region
      %s579 = ssub.s32 128, 128
      %580 = vsyncadd [#allocation4], %s579
      %s582 = sshll.u32 [#allocation13], 4
      %s583 = int_to_ptr.vmem [resolvable:$true] %s582
      %585 = dma.vmem_to_hbm [thread:$0]  %s583, 128, %s10, [#allocation4]
    $region69: #{tpu_custom_call.1} parent=1 // pred_fallthru
      _
    // Predicated region
    $region70: #{tpu_custom_call.1} parent=1 // pred_check
      _
    $region71: #{tpu_custom_call.1} parent=1 // pred_check_branch
      %587 = sbr.rel (0) target = $region73
    $region72: #{tpu_custom_call.1} parent=1 // pred_region
      %588 = dma.done [#allocation4], 128
    $region73: #{tpu_custom_call.1} parent=1 // pred_fallthru
      _
    %589 = vsyncpa [#allocation3], 1
    %590 = vsyncpa [#allocation6], 1
    %591 = vsyncpa [#allocation9], 1
    %592 = vsyncpa [#allocation12], 1
    %593 = vsyncpa [#allocation4], 1

</llo_original>
